<compile_context>
chip_gen: v7x
topology: tpu7x:2x2x1
jax: 0.10.0
libtpu: 0.0.40
codegen_flags: <defaults>
</compile_context>

<pallas_src>
import jax
import jax.numpy as jnp
from jax.experimental import pallas as pl
from jax.experimental.pallas import tpu as pltpu

_CHUNK = 128  # one vreg of lanes per accumulation step


def _round_up(x, m):
    return (x + m - 1) // m * m


def _regression_kernel(x_ref, w_ref, b_ref, o_ref):
    # x_ref: (TB, D) VMEM tile; w_ref: (1, D) VMEM (resident); b_ref: (1,) SMEM;
    # o_ref: (1, TB) VMEM (lane-dense output row block).
    tb, d = x_ref.shape
    n_full = d // _CHUNK
    rem = d - n_full * _CHUNK

    if n_full > 0:
        # Lane-wise VALU accumulation over 128-lane chunks; per-chunk loads come
        # straight from the VMEM ref (no full-tile f32 temporary).
        acc = (x_ref[:, 0:_CHUNK].astype(jnp.float32)
               * w_ref[:, 0:_CHUNK].astype(jnp.float32))
        for c in range(1, n_full):
            lo = c * _CHUNK
            acc = acc + (x_ref[:, lo:lo + _CHUNK].astype(jnp.float32)
                         * w_ref[:, lo:lo + _CHUNK].astype(jnp.float32))
        row = jnp.sum(acc, axis=-1)  # single cross-lane (XLU) reduce per tile
    else:
        row = jnp.zeros((tb,), jnp.float32)

    if rem:
        lo = n_full * _CHUNK
        row = row + jnp.sum(x_ref[:, lo:d].astype(jnp.float32)
                            * w_ref[:, lo:d].astype(jnp.float32), axis=-1)

    row = row + b_ref[0].astype(jnp.float32)  # scalar bias from SMEM
    o_ref[...] = row.reshape(1, -1).astype(o_ref.dtype)


def regression_layer(x, weight, bias, *, tb=None):
    """Forward pass of nn.Linear(size, 1): returns [B, 1]."""
    B, D = x.shape
    assert weight.shape == (1, D)
    itemsize = jnp.dtype(x.dtype).itemsize

    # ---- generation-aware VMEM budgets -------------------------------------
    try:
        vmem_cap = int(pltpu.get_tpu_info().vmem_capacity_bytes)
    except Exception:
        vmem_cap = 64 * 1024 * 1024  # conservative (v7x per-TC) fallback
    if vmem_cap <= 80 * 1024 * 1024:          # v7x-class: 64 MiB per TensorCore
        tile_budget = 12 * 1024 * 1024        # per x buffer (x2 double-buffer)
        vmem_limit = min(56 * 1024 * 1024, vmem_cap - 8 * 1024 * 1024)
    else:                                     # v5e / v6e: 128 MiB physical
        tile_budget = 24 * 1024 * 1024
        vmem_limit = min(96 * 1024 * 1024, vmem_cap - 32 * 1024 * 1024)

    # VMEM tiles are padded to 128 lanes -> size against the padded width.
    d_pad = _round_up(D, 128)
    row_bytes = d_pad * itemsize

    # ---- batch tile selection ----------------------------------------------
    if tb is None:
        max_tb = max(128, (tile_budget // row_bytes) // 128 * 128)
        tb = min(4096, max_tb)
        b_ceil = _round_up(max(B, 1), 128)
        tb = min(tb, b_ceil)                  # don't over-pad small batches
        # v7x megacore: prefer >= 2 tiles so the parallel axis can split across
        # the 2 TensorCores (harmless extra grid step on v5e/v6e).
        if b_ceil >= 256 and pl.cdiv(B, tb) < 2:
            tb = max(128, _round_up(pl.cdiv(B, 2), 128))
    assert tb >= 128 and tb % 128 == 0

    # Resident weight + double-buffered x tiles must fit the scoped VMEM window.
    # (For very wide D this needs a K-tiled feature grid axis; assert instead.)
    need = 2 * tb * row_bytes + 2 * d_pad * 4 + 4 * 1024 * 1024
    assert need <= vmem_limit, (
        f"regression_layer: feature dim D={D} too wide for single-block "
        f"streaming at tb={tb} (need {need} B > {vmem_limit} B); add K-tiling.")

    # ---- grid: no padding copy of x; last partial block's tail is sliced off.
    num_tiles = pl.cdiv(B, tb)
    out_cols = num_tiles * tb                 # lane-dense output slab width

    out = pl.pallas_call(
        _regression_kernel,
        out_shape=jax.ShapeDtypeStruct((1, out_cols), x.dtype),
        grid_spec=pltpu.PrefetchScalarGridSpec(
            num_scalar_prefetch=0,
            grid=(num_tiles,),
            in_specs=[
                # x: stream batch tiles (double-buffered by the pipeline); the
                # last block may run past B -> masked DMA, garbage tail rows.
                pl.BlockSpec((tb, D), lambda i: (i, 0)),
                # weight: lane-dense [1, D], same block every step (resident).
                pl.BlockSpec((1, D), lambda i: (0, 0)),
                # bias: single scalar in SMEM (no lane-padded VMEM buffer).
                pl.BlockSpec(memory_space=pltpu.MemorySpace.SMEM),
            ],
            # Lane-dense output: one (1, TB) block of the (1, out_cols) row.
            out_specs=pl.BlockSpec((1, tb), lambda i: (0, i)),
        ),
        compiler_params=pltpu.CompilerParams(
            dimension_semantics=("parallel",),   # megacore-shardable batch axis
            vmem_limit_bytes=vmem_limit,
        ),
        cost_estimate=pl.CostEstimate(
            flops=2 * B * D,
            transcendentals=0,
            bytes_accessed=B * D * itemsize + D * itemsize + B * itemsize + 4,
        ),
    )(x, weight, bias)

    # Columns >= B hold results of undefined tail rows; slice them off.
    return out[0, :B].reshape(B, 1)


if __name__ == "__main__":
    key = jax.random.PRNGKey(0)
    k_x, k_w, k_b, k_x2 = jax.random.split(key, 4)

    batch, size = 8, 32

    # Deterministic "PyTorch-default-like" init: U(-1/sqrt(size), 1/sqrt(size))
    bound = 1.0 / (size ** 0.5)
    weight = jax.random.uniform(k_w, (1, size), jnp.float32, -bound, bound)
    bias = jax.random.uniform(k_b, (1,), jnp.float32, -bound, bound)

    # Small-batch path (single oversized block: B=8 < tb=128, masked DMA).
    x = jax.random.normal(k_x, (batch, size), jnp.float32)
    y = regression_layer(x, weight, bias)
    jax.block_until_ready(y)
    y_ref = x @ weight.T + bias
    assert y.shape == (batch, 1)
    assert jnp.allclose(y, y_ref, atol=1e-5, rtol=1e-5)

    # Multi-tile ragged-batch path with NO wrapper pad of x
    # (tb=128 -> 3 grid steps, last block partial since 260 % 128 != 0).
    batch2 = 260
    x2 = jax.random.normal(k_x2, (batch2, size), jnp.float32)
    y2 = regression_layer(x2, weight, bias, tb=128)
    jax.block_until_ready(y2)
    y2_ref = x2 @ weight.T + bias
    assert y2.shape == (batch2, 1)
    assert jnp.allclose(y2, y2_ref, atol=1e-5, rtol=1e-5)

    print("KERNEL_OK")
</pallas_src>

<mosaic_0001>
module attributes {stable_mosaic.version = 11 : i64} {
  func.func @_regression_kernel(%arg0: i32, %arg1: memref<128x32xf32, #tpu.memory_space<vmem>>, %arg2: memref<1x32xf32, #tpu.memory_space<vmem>>, %arg3: memref<1xf32, #tpu.memory_space<smem>>, %arg4: memref<1x128xf32, #tpu.memory_space<vmem>>) attributes {dimension_semantics = [#tpu.dimension_semantics<parallel>], iteration_bounds = array<i64: 1>, scalar_prefetch = 0 : i64, scratch_operands = 0 : i64, tpu.core_type = #tpu.core_type<tc>, window_params = [{transform_indices = @transform_0, window_bounds = array<i64: 128, 32>}, {pipeline_mode = #tpu.pipeline_mode<synchronous>, transform_indices = @transform_1, window_bounds = array<i64: 1, 32>}, {transform_indices = @transform_2, window_bounds = array<i64: 1>}, {transform_indices = @transform_3, window_bounds = array<i64: 1, 128>}]} {
    %cst = arith.constant 0.000000e+00 : f32
    %0 = vector.broadcast %cst : f32 to vector<128xf32>
    %c0 = arith.constant 0 : index
    %c0_0 = arith.constant 0 : index
    %1 = vector.load %arg1[%c0, %c0_0] : memref<128x32xf32, #tpu.memory_space<vmem>>, vector<128x32xf32>
    %c0_1 = arith.constant 0 : index
    %c0_2 = arith.constant 0 : index
    %2 = vector.load %arg2[%c0_1, %c0_2] : memref<1x32xf32, #tpu.memory_space<vmem>>, vector<1x32xf32>
    %3 = vector.broadcast %2 : vector<1x32xf32> to vector<128x32xf32>
    %4 = arith.mulf %1, %3 : vector<128x32xf32>
    %cst_3 = arith.constant dense<0.000000e+00> : vector<128xf32>
    %5 = vector.multi_reduction <add>, %4, %cst_3 [1] : vector<128x32xf32> to vector<128xf32>
    %6 = arith.addf %0, %5 : vector<128xf32>
    %c0_4 = arith.constant 0 : index
    %7 = memref.load %arg3[%c0_4] : memref<1xf32, #tpu.memory_space<smem>>
    %8 = vector.broadcast %7 : f32 to vector<128xf32>
    %9 = arith.addf %6, %8 : vector<128xf32>
    %10 = vector.shape_cast %9 : vector<128xf32> to vector<1x128xf32>
    %c0_5 = arith.constant 0 : index
    %c0_6 = arith.constant 0 : index
    %11 = vector.load %arg4[%c0_5, %c0_6] : memref<1x128xf32, #tpu.memory_space<vmem>>, vector<1x128xf32>
    tpu.vector_store %arg4[%c0_5, %c0_6], %10 {strides = array<i32>} : memref<1x128xf32, #tpu.memory_space<vmem>>, vector<1x128xf32>,
    return
  }
  func.func @transform_0(%arg0: i32) -> (i32, i32) {
    %c0_i32 = arith.constant 0 : i32
    %c0_i32_0 = arith.constant 0 : i32
    return %arg0, %c0_i32 : i32, i32
  }
  func.func @transform_1(%arg0: i32) -> (i32, i32) {
    %c0_i32 = arith.constant 0 : i32
    %c0_i32_0 = arith.constant 0 : i32
    %c0_i32_1 = arith.constant 0 : i32
    return %c0_i32, %c0_i32_0 : i32, i32
  }
  func.func @transform_2(%arg0: i32) -> i32 {
    %c0_i32 = arith.constant 0 : i32
    %c0_i32_0 = arith.constant 0 : i32
    return %c0_i32 : i32
  }
  func.func @transform_3(%arg0: i32) -> (i32, i32) {
    %c0_i32 = arith.constant 0 : i32
    %c0_i32_0 = arith.constant 0 : i32
    return %c0_i32, %arg0 : i32, i32
  }
}

</mosaic_0001>

<llo_original>
// kernel: tpu_custom_call.1
$region0: #{tpu_custom_call.1}
  #allocation0 [shape = 'u32[]', space=smem, size = 0x4, offset = 0x4, fixed_abs, tag = 'smem constant byte address 0x4 - core index']
  #allocation1 [shape = 'u32[144,128]{1,0:T(1,128)}', space=vmem, size = 0x12000, scoped, tag = 'internal scratch']
  #allocation2 [shape = 'f32[1]{0:T(128)S(6)}', space=smem, size = 0x200, scoped, tag = 'scoped memory for tpu_custom_call.1']
  %s0 = inlined_call_operand.hbm [shape: f32[8,32], index: 0, kind: input, shape index: {}]
  %s1 = inlined_call_operand.vmem [shape: f32[1,32], index: 1, kind: input, shape index: {}]
  %s2 = inlined_call_operand.<no memory space> [shape: f32[1], index: 2, kind: input, shape index: {}]
  %s3 = inlined_call_operand.hbm [shape: f32[1,128], index: 3, kind: output, shape index: {}]
  %s4 = sld [smem:[#allocation0]]
  $region26: #{tpu_custom_call.1} parent=0
    _
  %s6 = ssub.s32 1, %s4
  %s7 = scalar_select 0, %s6, %s4
  %8 = sst [smem:[#allocation2]] %s2
  $region1: #{tpu_custom_call.1} parent=0
    #allocation3 [shape = 'u8[65536]{0}', space=vmem, size = 0x10000, scoped, tag = 'input window, operand 0, single buffered']
    #allocation4 [shape = 's32[1]{0}', space=sflag, size = 0x4, scoped, tag = 'scoped memory for tpu_custom_call.1']
    #allocation5 [shape = 's32[1]{0}', space=sflag, size = 0x4, scoped, tag = 'scoped memory for tpu_custom_call.1']
    #allocation6 [shape = 'u8[512]{0}', space=vmem, size = 0x400, scoped, tag = 'output window, operand 0, single buffered']
    %9 = vsyncpa [#allocation4], 0
    %10 = vsyncpa [#allocation5], 0
    // Predicated region
    $region2: #{tpu_custom_call.1} parent=1 // pred_check
      _
    $region3: #{tpu_custom_call.1} parent=1 // pred_check_branch
      %12 = sbr.rel (0) target = $region5
    $region4: #{tpu_custom_call.1} parent=1 // pred_region
      %s14 = ssub.s32 2048, 128
      %15 = vsyncadd [#allocation4], %s14
      %s16 = sshll.u32 [#allocation3], 4
      %s17 = int_to_ptr.vmem [resolvable:$true] %s16
      %22 = dma.hbm_to_vmem [thread:$0]  %s0, 128, %s17, [#allocation4], 128, 128, 8
    $region5: #{tpu_custom_call.1} parent=1 // pred_fallthru
      _
    // Predicated region
    $region6: #{tpu_custom_call.1} parent=1 // pred_check
      _
    $region7: #{tpu_custom_call.1} parent=1 // pred_check_branch
      %24 = sbr.rel (0) target = $region9
    $region8: #{tpu_custom_call.1} parent=1 // pred_region
      _
    $region9: #{tpu_custom_call.1} parent=1 // pred_fallthru
      _
    // Predicated region
    $region10: #{tpu_custom_call.1} parent=1 // pred_check
      _
    $region11: #{tpu_custom_call.1} parent=1 // pred_check_branch
      %26 = sbr.rel (0) target = $region13
    $region12: #{tpu_custom_call.1} parent=1 // pred_region
      _
    $region13: #{tpu_custom_call.1} parent=1 // pred_fallthru
      _
    // Predicated region
    $region14: #{tpu_custom_call.1} parent=1 // pred_check
      _
    $region15: #{tpu_custom_call.1} parent=1 // pred_check_branch
      %28 = sbr.rel (0) target = $region17
    $region16: #{tpu_custom_call.1} parent=1 // pred_region
      %29 = dma.done [#allocation4], 2048
    $region17: #{tpu_custom_call.1} parent=1 // pred_fallthru
      _
    %v30 = vld [vmem:[#allocation3] sm:$0xff]
    %v31 = vld [vmem:[#allocation3 + $0x8] sm:$0xff]
    %v32 = vld [vmem:[#allocation3 + $0x10] sm:$0xff]
    %v33 = vld [vmem:[#allocation3 + $0x18] sm:$0xff]
    %v34 = vld [vmem:[#allocation3 + $0x20] sm:$0xff]
    %v35 = vld [vmem:[#allocation3 + $0x28] sm:$0xff]
    %v36 = vld [vmem:[#allocation3 + $0x30] sm:$0xff]
    %v37 = vld [vmem:[#allocation3 + $0x38] sm:$0xff]
    %v38 = vld [vmem:[#allocation3 + $0x40] sm:$0xff]
    %v39 = vld [vmem:[#allocation3 + $0x48] sm:$0xff]
    %v40 = vld [vmem:[#allocation3 + $0x50] sm:$0xff]
    %v41 = vld [vmem:[#allocation3 + $0x58] sm:$0xff]
    %v42 = vld [vmem:[#allocation3 + $0x60] sm:$0xff]
    %v43 = vld [vmem:[#allocation3 + $0x68] sm:$0xff]
    %v44 = vld [vmem:[#allocation3 + $0x70] sm:$0xff]
    %v45 = vld [vmem:[#allocation3 + $0x78] sm:$0xff]
    %v46 = vld [vmem:[%s1] sm:$0x1]
    %v48 = vlaneseq
    %v49 = vshrl.u32 %v48, 7
    %v50 = vsub.s32 0, %v49
    %v51 = vrot.slane %v46, %v50
    %v53 = vmul.f32 %v30, %v51
    %v54 = vmul.f32 %v31, %v51
    %v55 = vmul.f32 %v32, %v51
    %v56 = vmul.f32 %v33, %v51
    %v57 = vmul.f32 %v34, %v51
    %v58 = vmul.f32 %v35, %v51
    %v59 = vmul.f32 %v36, %v51
    %v60 = vmul.f32 %v37, %v51
    %v61 = vmul.f32 %v38, %v51
    %v62 = vmul.f32 %v39, %v51
    %v63 = vmul.f32 %v40, %v51
    %v64 = vmul.f32 %v41, %v51
    %v65 = vmul.f32 %v42, %v51
    %v66 = vmul.f32 %v43, %v51
    %v67 = vmul.f32 %v44, %v51
    %v68 = vmul.f32 %v45, %v51
    %vm69 = vcmask 261120
    %v70 = vsel %vm69, %v53, 0.0
    %71 = vadd.xlane.f32.xlu0 %v70
    %v72 = vpop.xlane.xlu0 %71
    %v73 = vsel %vm69, %v54, 0.0
    %74 = vadd.xlane.f32.xlu0 %v73
    %v75 = vpop.xlane.xlu0 %74
    %v76 = vsel %vm69, %v55, 0.0
    %77 = vadd.xlane.f32.xlu0 %v76
    %v78 = vpop.xlane.xlu0 %77
    %v79 = vsel %vm69, %v56, 0.0
    %80 = vadd.xlane.f32.xlu0 %v79
    %v81 = vpop.xlane.xlu0 %80
    %v82 = vsel %vm69, %v57, 0.0
    %83 = vadd.xlane.f32.xlu0 %v82
    %v84 = vpop.xlane.xlu0 %83
    %v85 = vsel %vm69, %v58, 0.0
    %86 = vadd.xlane.f32.xlu0 %v85
    %v87 = vpop.xlane.xlu0 %86
    %v88 = vsel %vm69, %v59, 0.0
    %89 = vadd.xlane.f32.xlu0 %v88
    %v90 = vpop.xlane.xlu0 %89
    %v91 = vsel %vm69, %v60, 0.0
    %92 = vadd.xlane.f32.xlu0 %v91
    %v93 = vpop.xlane.xlu0 %92
    %v94 = vsel %vm69, %v61, 0.0
    %95 = vadd.xlane.f32.xlu0 %v94
    %v96 = vpop.xlane.xlu0 %95
    %v97 = vsel %vm69, %v62, 0.0
    %98 = vadd.xlane.f32.xlu0 %v97
    %v99 = vpop.xlane.xlu0 %98
    %v100 = vsel %vm69, %v63, 0.0
    %101 = vadd.xlane.f32.xlu0 %v100
    %v102 = vpop.xlane.xlu0 %101
    %v103 = vsel %vm69, %v64, 0.0
    %104 = vadd.xlane.f32.xlu0 %v103
    %v105 = vpop.xlane.xlu0 %104
    %v106 = vsel %vm69, %v65, 0.0
    %107 = vadd.xlane.f32.xlu0 %v106
    %v108 = vpop.xlane.xlu0 %107
    %v109 = vsel %vm69, %v66, 0.0
    %110 = vadd.xlane.f32.xlu0 %v109
    %v111 = vpop.xlane.xlu0 %110
    %v112 = vsel %vm69, %v67, 0.0
    %113 = vadd.xlane.f32.xlu0 %v112
    %v114 = vpop.xlane.xlu0 %113
    %v115 = vsel %vm69, %v68, 0.0
    %116 = vadd.xlane.f32.xlu0 %v115
    %v117 = vpop.xlane.xlu0 %116
    %v118 = vadd.f32 %v72, 0.0
    %v119 = vadd.f32 %v75, 0.0
    %v120 = vadd.f32 %v78, 0.0
    %v121 = vadd.f32 %v81, 0.0
    %v122 = vadd.f32 %v84, 0.0
    %v123 = vadd.f32 %v87, 0.0
    %v124 = vadd.f32 %v90, 0.0
    %v125 = vadd.f32 %v93, 0.0
    %v126 = vadd.f32 %v96, 0.0
    %v127 = vadd.f32 %v99, 0.0
    %v128 = vadd.f32 %v102, 0.0
    %v129 = vadd.f32 %v105, 0.0
    %v130 = vadd.f32 %v108, 0.0
    %v131 = vadd.f32 %v111, 0.0
    %v132 = vadd.f32 %v114, 0.0
    %v133 = vadd.f32 %v117, 0.0
    %s134 = sld [smem:[#allocation2]]
    %v135 = vstv %s134
    %v136 = vadd.f32 %v118, %v135
    %v137 = vadd.f32 %v119, %v135
    %v138 = vadd.f32 %v120, %v135
    %v139 = vadd.f32 %v121, %v135
    %v140 = vadd.f32 %v122, %v135
    %v141 = vadd.f32 %v123, %v135
    %v142 = vadd.f32 %v124, %v135
    %v143 = vadd.f32 %v125, %v135
    %v144 = vadd.f32 %v126, %v135
    %v145 = vadd.f32 %v127, %v135
    %v146 = vadd.f32 %v128, %v135
    %v147 = vadd.f32 %v129, %v135
    %v148 = vadd.f32 %v130, %v135
    %v149 = vadd.f32 %v131, %v135
    %v150 = vadd.f32 %v132, %v135
    %v151 = vadd.f32 %v133, %v135
    %v168 = vlaneseq
    %v169 = vand.u32 %v168, 127
    %v170 = vlaneseq
    %v171 = vshrl.u32 %v170, 7
    %v172 = vsub.s32 %v169, %v171
    %v173 = vrot.slane %v136, %v172
    %v174 = vadd.s32 %v169, 4294967288
    %v175 = vlaneseq
    %v176 = vshrl.u32 %v175, 7
    %v177 = vsub.s32 %v174, %v176
    %v178 = vrot.slane %v137, %v177
    %vm179 = vcmask 130112
    %v180 = vsel %vm179, %v178, %v173
    %v181 = vadd.s32 %v169, 4294967280
    %v182 = vlaneseq
    %v183 = vshrl.u32 %v182, 7
    %v184 = vsub.s32 %v181, %v183
    %v185 = vrot.slane %v138, %v184
    %vm186 = vcmask 195712
    %v187 = vsel %vm186, %v185, %v180
    %v188 = vadd.s32 %v169, 4294967272
    %v189 = vlaneseq
    %v190 = vshrl.u32 %v189, 7
    %v191 = vsub.s32 %v188, %v190
    %v192 = vrot.slane %v139, %v191
    %vm193 = vcmask 261312
    %v194 = vsel %vm193, %v192, %v187
    %v195 = vadd.s32 %v169, 4294967264
    %v196 = vlaneseq
    %v197 = vshrl.u32 %v196, 7
    %v198 = vsub.s32 %v195, %v197
    %v199 = vrot.slane %v140, %v198
    %vm200 = vcmask 326912
    %v201 = vsel %vm200, %v199, %v194
    %v202 = vadd.s32 %v169, 4294967256
    %v203 = vlaneseq
    %v204 = vshrl.u32 %v203, 7
    %v205 = vsub.s32 %v202, %v204
    %v206 = vrot.slane %v141, %v205
    %vm207 = vcmask 392512
    %v208 = vsel %vm207, %v206, %v201
    %v209 = vadd.s32 %v169, 4294967248
    %v210 = vlaneseq
    %v211 = vshrl.u32 %v210, 7
    %v212 = vsub.s32 %v209, %v211
    %v213 = vrot.slane %v142, %v212
    %vm214 = vcmask 458112
    %v215 = vsel %vm214, %v213, %v208
    %v216 = vadd.s32 %v169, 4294967240
    %v217 = vlaneseq
    %v218 = vshrl.u32 %v217, 7
    %v219 = vsub.s32 %v216, %v218
    %v220 = vrot.slane %v143, %v219
    %vm221 = vcmask 523712
    %v222 = vsel %vm221, %v220, %v215
    %v223 = vadd.s32 %v169, 4294967232
    %v224 = vlaneseq
    %v225 = vshrl.u32 %v224, 7
    %v226 = vsub.s32 %v223, %v225
    %v227 = vrot.slane %v144, %v226
    %vm228 = vcmask 589312
    %v229 = vsel %vm228, %v227, %v222
    %v230 = vadd.s32 %v169, 4294967224
    %v231 = vlaneseq
    %v232 = vshrl.u32 %v231, 7
    %v233 = vsub.s32 %v230, %v232
    %v234 = vrot.slane %v145, %v233
    %vm235 = vcmask 654912
    %v236 = vsel %vm235, %v234, %v229
    %v237 = vadd.s32 %v169, 4294967216
    %v238 = vlaneseq
    %v239 = vshrl.u32 %v238, 7
    %v240 = vsub.s32 %v237, %v239
    %v241 = vrot.slane %v146, %v240
    %vm242 = vcmask 720512
    %v243 = vsel %vm242, %v241, %v236
    %v244 = vadd.s32 %v169, 4294967208
    %v245 = vlaneseq
    %v246 = vshrl.u32 %v245, 7
    %v247 = vsub.s32 %v244, %v246
    %v248 = vrot.slane %v147, %v247
    %vm249 = vcmask 786112
    %v250 = vsel %vm249, %v248, %v243
    %v251 = vadd.s32 %v169, 4294967200
    %v252 = vlaneseq
    %v253 = vshrl.u32 %v252, 7
    %v254 = vsub.s32 %v251, %v253
    %v255 = vrot.slane %v148, %v254
    %vm256 = vcmask 851712
    %v257 = vsel %vm256, %v255, %v250
    %v258 = vadd.s32 %v169, 4294967192
    %v259 = vlaneseq
    %v260 = vshrl.u32 %v259, 7
    %v261 = vsub.s32 %v258, %v260
    %v262 = vrot.slane %v149, %v261
    %vm263 = vcmask 917312
    %v264 = vsel %vm263, %v262, %v257
    %v265 = vadd.s32 %v169, 4294967184
    %v266 = vlaneseq
    %v267 = vshrl.u32 %v266, 7
    %v268 = vsub.s32 %v265, %v267
    %v269 = vrot.slane %v150, %v268
    %vm270 = vcmask 982912
    %v271 = vsel %vm270, %v269, %v264
    %v272 = vadd.s32 %v169, 4294967176
    %v273 = vlaneseq
    %v274 = vshrl.u32 %v273, 7
    %v275 = vsub.s32 %v272, %v274
    %v276 = vrot.slane %v151, %v275
    %vm277 = vcmask 1048512
    %v278 = vsel %vm277, %v276, %v271
    %280 = vst [vmem:[#allocation6] sm:$0x1] %v278
    // Predicated region
    $region18: #{tpu_custom_call.1} parent=1 // pred_check
      _
    $region19: #{tpu_custom_call.1} parent=1 // pred_check_branch
      %282 = sbr.rel (0) target = $region21
    $region20: #{tpu_custom_call.1} parent=1 // pred_region
      %s284 = ssub.s32 16, 16
      %285 = vsyncadd [#allocation5], %s284
      %s287 = sshll.u32 [#allocation6], 4
      %s288 = int_to_ptr.vmem [resolvable:$true] %s287
      %290 = dma.vmem_to_hbm [thread:$0]  %s288, 16, %s3, [#allocation5]
    $region21: #{tpu_custom_call.1} parent=1 // pred_fallthru
      _
    // Predicated region
    $region22: #{tpu_custom_call.1} parent=1 // pred_check
      _
    $region23: #{tpu_custom_call.1} parent=1 // pred_check_branch
      %292 = sbr.rel (0) target = $region25
    $region24: #{tpu_custom_call.1} parent=1 // pred_region
      %293 = dma.done [#allocation5], 16
    $region25: #{tpu_custom_call.1} parent=1 // pred_fallthru
      _
    %294 = vsyncpa [#allocation4], 1
    %295 = vsyncpa [#allocation5], 1

</llo_original>
